<compile_context>
chip_gen: v5e
topology: v5e:2x2
jax: 0.10.0
libtpu: 0.0.40
codegen_flags: <defaults>
</compile_context>

<pallas_src>
import jax
import jax.numpy as jnp
from jax.experimental import pallas as pl
from jax.experimental.pallas import tpu as pltpu

IMG_DIM = 512
TXT_DIM = 768
FUSED_DIM = IMG_DIM + TXT_DIM
NUM_CLASSES = 2
C_PAD = 128     # lane-dense class padding: exact native MXU N tile everywhere
TM_MAX = 1024   # batch tile cap: ~6.6 MiB/step VMEM, 85%+ of HBM roofline


def _round_up(x, m):
    return ((x + m - 1) // m) * m


# ----------------------------------------------------------------------------
# Pallas kernel: fused concat + Linear(1280 -> C_PAD), batch-tiled
# ----------------------------------------------------------------------------
def fusion_classifier_kernel(img_ref, txt_ref, w_ref, b_ref, out_ref):
    # Split-weight identity; 512 is sublane-aligned even for bf16 packing, so
    # the static slices are zero-cost views of the single resident weight.
    acc = jnp.dot(img_ref[...], w_ref[:IMG_DIM, :],
                  preferred_element_type=jnp.float32)
    acc = acc + jnp.dot(txt_ref[...], w_ref[IMG_DIM:, :],
                        preferred_element_type=jnp.float32)
    # Epilogue: one (1, C_PAD) broadcast-add + cast, lane-dense store.
    out_ref[...] = (acc + b_ref[...]).astype(out_ref.dtype)


def fusion_classifier(img_feat, txt_feat, w_pad_bf16, b_pad_f32, num_classes):
    """img_feat [B,512], txt_feat [B,768], w_pad [1280,128] bf16,
    b_pad [1,128] f32 -> logits [B, num_classes] f32."""
    B = img_feat.shape[0]

    img_bf = img_feat.astype(jnp.bfloat16)   # no-op: encoders already emit bf16
    txt_bf = txt_feat.astype(jnp.bfloat16)

    # Batch tile: multiple of 8 sublanes, capped at TM_MAX. No activation
    # padding: grid = ceil(B / TM); Pallas masks the ragged last block and the
    # padded class lanes are sliced off below.
    TM = min(TM_MAX, _round_up(max(B, 1), 8))
    if B >= 16:
        # Keep >= 2 grid steps so ("parallel",) shards across v7x's 2 TCs.
        TM = min(TM, _round_up(pl.cdiv(B, 2), 8))
    grid = (pl.cdiv(B, TM),)

    out = pl.pallas_call(
        fusion_classifier_kernel,
        out_shape=jax.ShapeDtypeStruct((B, C_PAD), jnp.float32),
        grid=grid,
        in_specs=[
            pl.BlockSpec((TM, IMG_DIM), lambda i: (i, 0)),
            pl.BlockSpec((TM, TXT_DIM), lambda i: (i, 0)),
            # Grid-invariant residents: single-buffered.
            pl.BlockSpec((FUSED_DIM, C_PAD), lambda i: (0, 0),
                         pipeline_mode=pl.Buffered(1)),
            pl.BlockSpec((1, C_PAD), lambda i: (0, 0),
                         pipeline_mode=pl.Buffered(1)),
        ],
        out_specs=pl.BlockSpec((TM, C_PAD), lambda i: (i, 0)),
        compiler_params=pltpu.CompilerParams(
            dimension_semantics=("parallel",)),
    )(img_bf, txt_bf, w_pad_bf16, b_pad_f32)

    return out[:, :num_classes]


# ----------------------------------------------------------------------------
# Deterministic stand-in encoders (plain-JAX glue), emitting bf16 directly.
# ----------------------------------------------------------------------------
def standin_image_encoder(image, proj):
    # TODO(synk): pretrained image encoder (e.g. CLIP) has no in-script Pallas
    #             equivalent; replaced by a fixed linear projection to 512.
    B = image.shape[0]
    flat = image.reshape(B, -1).astype(proj.dtype)
    return flat @ proj                                    # bf16 [B, 512]


def standin_text_encoder(input_ids, attention_mask, embed_table, proj):
    # TODO(synk): pretrained text encoder (e.g. BERT) has no in-script Pallas
    #             equivalent; emulate last_hidden_state[:, 0, :] with an
    #             embedding lookup of token 0 projected to 768 dims.
    cls_emb = embed_table[input_ids[:, 0]]                # [B, E] bf16
    cls_emb = cls_emb * attention_mask[:, 0:1].astype(cls_emb.dtype)
    return cls_emb @ proj                                 # bf16 [B, 768]


# ----------------------------------------------------------------------------
# Full module wrapper (one jitted program: encoder dots + Pallas head).
# ----------------------------------------------------------------------------
def meme_classifier_forward(params, image, input_ids, attention_mask):
    img_feat = standin_image_encoder(image, params["img_proj"])
    txt_feat = standin_text_encoder(input_ids, attention_mask,
                                    params["embed_table"], params["txt_proj"])
    return fusion_classifier(img_feat, txt_feat,
                             params["cls_w_pad"], params["cls_b_pad"],
                             NUM_CLASSES)


meme_classifier_forward_jit = jax.jit(meme_classifier_forward)


def init_params(key, img_flat_dim, vocab_size, embed_dim, num_classes):
    k1, k2, k3, k4, k5 = jax.random.split(key, 5)
    bound = 1.0 / jnp.sqrt(FUSED_DIM)  # PyTorch Linear default init
    cls_w = jax.random.uniform(k4, (FUSED_DIM, num_classes),
                               jnp.float32, -bound, bound)
    cls_b = jax.random.uniform(k5, (num_classes,), jnp.float32, -bound, bound)
    # Hoisted out of the forward: pad class dim to 128 lanes + cast weight to
    # bf16 once here, so no per-call zeros/scatter/cast in front of the kernel.
    cls_w_pad = (jnp.zeros((FUSED_DIM, C_PAD), jnp.float32)
                 .at[:, :num_classes].set(cls_w)).astype(jnp.bfloat16)
    cls_b_pad = jnp.zeros((1, C_PAD), jnp.float32).at[:, :num_classes].set(cls_b)
    return {
        # Stand-in encoder params in bf16 so the encoder dots emit bf16
        # features directly (no standalone f32->bf16 pass over activations).
        "img_proj": (jax.random.normal(k1, (img_flat_dim, IMG_DIM),
                                       jnp.float32) * 0.02).astype(jnp.bfloat16),
        "embed_table": (jax.random.normal(k2, (vocab_size, embed_dim),
                                          jnp.float32) * 0.02).astype(jnp.bfloat16),
        "txt_proj": (jax.random.normal(k3, (embed_dim, TXT_DIM),
                                       jnp.float32) * 0.02).astype(jnp.bfloat16),
        "cls_w": cls_w,           # f32 originals kept for the reference check
        "cls_b": cls_b,
        "cls_w_pad": cls_w_pad,   # [1280, 128] bf16, consumed by the kernel
        "cls_b_pad": cls_b_pad,   # [1, 128] f32, consumed by the kernel
    }


if __name__ == "__main__":
    key = jax.random.PRNGKey(0)
    kp, ki, kt = jax.random.split(key, 3)

    B, C, H, W = 2, 3, 16, 16
    SEQ, VOCAB, EMB = 8, 100, 32

    image = jax.random.normal(ki, (B, C, H, W), jnp.float32)
    input_ids = jax.random.randint(kt, (B, SEQ), 0, VOCAB, jnp.int32)
    attention_mask = jnp.ones((B, SEQ), jnp.float32)

    params = init_params(kp, C * H * W, VOCAB, EMB, NUM_CLASSES)

    logits = meme_classifier_forward_jit(params, image, input_ids,
                                         attention_mask)
    logits = jax.block_until_ready(logits)
    assert logits.shape == (B, NUM_CLASSES)
    assert bool(jnp.all(jnp.isfinite(logits)))

    # Reference check: same bf16-rounded features / weight, f32 accumulation
    # in plain jnp (bf16 x bf16 products are exact in f32, so the kernel and
    # the reference differ only by accumulation order).
    img_feat = standin_image_encoder(image, params["img_proj"]).astype(jnp.float32)
    txt_feat = standin_text_encoder(input_ids, attention_mask,
                                    params["embed_table"],
                                    params["txt_proj"]).astype(jnp.float32)
    feats = jnp.concatenate([img_feat, txt_feat], axis=1)
    w_bf = params["cls_w"].astype(jnp.bfloat16).astype(jnp.float32)
    ref = feats @ w_bf + params["cls_b"]

    assert jnp.allclose(logits, ref, atol=2e-3, rtol=2e-3)

    print("KERNEL_OK")
</pallas_src>

<mosaic_0001>
module attributes {stable_mosaic.version = 11 : i64} {
  func.func @fusion_classifier_kernel(%arg0: i32, %arg1: memref<8x512xbf16, #tpu.memory_space<vmem>>, %arg2: memref<8x768xbf16, #tpu.memory_space<vmem>>, %arg3: memref<1280x128xbf16, #tpu.memory_space<vmem>>, %arg4: memref<1x128xf32, #tpu.memory_space<vmem>>, %arg5: memref<8x128xf32, #tpu.memory_space<vmem>>) attributes {dimension_semantics = [#tpu.dimension_semantics<parallel>], iteration_bounds = array<i64: 1>, scalar_prefetch = 0 : i64, scratch_operands = 0 : i64, tpu.core_type = #tpu.core_type<tc>, window_params = [{transform_indices = @transform_0, window_bounds = array<i64: 8, 512>}, {transform_indices = @transform_1, window_bounds = array<i64: 8, 768>}, {pipeline_mode = #tpu.pipeline_mode<synchronous>, transform_indices = @transform_2, window_bounds = array<i64: 1280, 128>}, {pipeline_mode = #tpu.pipeline_mode<synchronous>, transform_indices = @transform_3, window_bounds = array<i64: 1, 128>}, {transform_indices = @transform_4, window_bounds = array<i64: 8, 128>}]} {
    %c0 = arith.constant 0 : index
    %c0_0 = arith.constant 0 : index
    %0 = vector.load %arg1[%c0, %c0_0] : memref<8x512xbf16, #tpu.memory_space<vmem>>, vector<8x512xbf16>
    %c0_1 = arith.constant 0 : index
    %c0_2 = arith.constant 0 : index
    %1 = vector.load %arg3[%c0_1, %c0_2] : memref<1280x128xbf16, #tpu.memory_space<vmem>>, vector<512x128xbf16>
    %cst = arith.constant dense<0.000000e+00> : vector<8x128xf32>
    %2 = tpu.matmul %0, %1, %cst {dimension_numbers = #tpu.dot_dimension_numbers<[1], [0], [0], [1], [0, 0, 1, 1], [], []>} : vector<8x512xbf16>, vector<512x128xbf16>, vector<8x128xf32> -> vector<8x128xf32>
    %c0_3 = arith.constant 0 : index
    %c0_4 = arith.constant 0 : index
    %3 = vector.load %arg2[%c0_3, %c0_4] : memref<8x768xbf16, #tpu.memory_space<vmem>>, vector<8x768xbf16>
    %c512 = arith.constant 512 : index
    %c0_5 = arith.constant 0 : index
    %4 = vector.load %arg3[%c512, %c0_5] : memref<1280x128xbf16, #tpu.memory_space<vmem>>, vector<768x128xbf16>
    %cst_6 = arith.constant dense<0.000000e+00> : vector<8x128xf32>
    %5 = tpu.matmul %3, %4, %cst_6 {dimension_numbers = #tpu.dot_dimension_numbers<[1], [0], [0], [1], [0, 0, 1, 1], [], []>} : vector<8x768xbf16>, vector<768x128xbf16>, vector<8x128xf32> -> vector<8x128xf32>
    %6 = arith.addf %2, %5 : vector<8x128xf32>
    %c0_7 = arith.constant 0 : index
    %c0_8 = arith.constant 0 : index
    %7 = vector.load %arg4[%c0_7, %c0_8] : memref<1x128xf32, #tpu.memory_space<vmem>>, vector<1x128xf32>
    %8 = vector.broadcast %7 : vector<1x128xf32> to vector<8x128xf32>
    %9 = arith.addf %6, %8 : vector<8x128xf32>
    %c0_9 = arith.constant 0 : index
    %c0_10 = arith.constant 0 : index
    %10 = vector.load %arg5[%c0_9, %c0_10] : memref<8x128xf32, #tpu.memory_space<vmem>>, vector<8x128xf32>
    tpu.vector_store %arg5[%c0_9, %c0_10], %9 {strides = array<i32>} : memref<8x128xf32, #tpu.memory_space<vmem>>, vector<8x128xf32>,
    return
  }
  func.func @transform_0(%arg0: i32) -> (i32, i32) {
    %c0_i32 = arith.constant 0 : i32
    %c0_i32_0 = arith.constant 0 : i32
    return %arg0, %c0_i32 : i32, i32
  }
  func.func @transform_1(%arg0: i32) -> (i32, i32) {
    %c0_i32 = arith.constant 0 : i32
    %c0_i32_0 = arith.constant 0 : i32
    return %arg0, %c0_i32 : i32, i32
  }
  func.func @transform_2(%arg0: i32) -> (i32, i32) {
    %c0_i32 = arith.constant 0 : i32
    %c0_i32_0 = arith.constant 0 : i32
    %c0_i32_1 = arith.constant 0 : i32
    return %c0_i32, %c0_i32_0 : i32, i32
  }
  func.func @transform_3(%arg0: i32) -> (i32, i32) {
    %c0_i32 = arith.constant 0 : i32
    %c0_i32_0 = arith.constant 0 : i32
    %c0_i32_1 = arith.constant 0 : i32
    return %c0_i32, %c0_i32_0 : i32, i32
  }
  func.func @transform_4(%arg0: i32) -> (i32, i32) {
    %c0_i32 = arith.constant 0 : i32
    %c0_i32_0 = arith.constant 0 : i32
    return %arg0, %c0_i32 : i32, i32
  }
}

</mosaic_0001>

<llo_original>
// kernel: meme_classifier_forward.1
$region0: #{meme_classifier_forward.1}
  #allocation0 [shape = 'u32[]', space=smem, size = 0x4, offset = 0x4, fixed_abs, tag = 'smem constant byte address 0x4 - core index']
  #allocation1 [shape = 'u32[72,128]{1,0:T(1,128)}', space=vmem, size = 0x9000, scoped, tag = 'internal scratch']
  %s0 = inlined_call_operand.vmem [shape: bf16[2,512], index: 0, kind: input, shape index: {}]
  %s1 = inlined_call_operand.vmem [shape: bf16[2,768], index: 1, kind: input, shape index: {}]
  %s2 = inlined_call_operand.vmem [shape: bf16[1280,128], index: 2, kind: input, shape index: {}]
  %s3 = inlined_call_operand.vmem [shape: f32[1,128], index: 3, kind: input, shape index: {}]
  %s4 = inlined_call_operand.hbm [shape: f32[2,128], index: 4, kind: output, shape index: {}]
  %s5 = sld [smem:[#allocation0]]
  $region26: #{meme_classifier_forward.1} parent=0
    _
  %s7 = ssub.s32 1, %s5
  %s8 = scalar_select 0, %s7, %s5
  $region1: #{meme_classifier_forward.1} parent=0
    #allocation2 [shape = 'u8[4096]{0}', space=vmem, size = 0x1000, scoped, tag = 'output window, operand 0, single buffered']
    #allocation3 [shape = 's32[1]{0}', space=sflag, size = 0x4, scoped, tag = 'scoped memory for meme_classifier_forward.1']
    %9 = vsyncpa [#allocation3], 0
    // Predicated region
    $region2: #{meme_classifier_forward.1} parent=1 // pred_check
      _
    $region3: #{meme_classifier_forward.1} parent=1 // pred_check_branch
      %11 = sbr.rel (0) target = $region5
    $region4: #{meme_classifier_forward.1} parent=1 // pred_region
      _
    $region5: #{meme_classifier_forward.1} parent=1 // pred_fallthru
      _
    // Predicated region
    $region6: #{meme_classifier_forward.1} parent=1 // pred_check
      _
    $region7: #{meme_classifier_forward.1} parent=1 // pred_check_branch
      %13 = sbr.rel (0) target = $region9
    $region8: #{meme_classifier_forward.1} parent=1 // pred_region
      _
    $region9: #{meme_classifier_forward.1} parent=1 // pred_fallthru
      _
    // Predicated region
    $region10: #{meme_classifier_forward.1} parent=1 // pred_check
      _
    $region11: #{meme_classifier_forward.1} parent=1 // pred_check_branch
      %15 = sbr.rel (0) target = $region13
    $region12: #{meme_classifier_forward.1} parent=1 // pred_region
      _
    $region13: #{meme_classifier_forward.1} parent=1 // pred_fallthru
      _
    // Predicated region
    $region14: #{meme_classifier_forward.1} parent=1 // pred_check
      _
    $region15: #{meme_classifier_forward.1} parent=1 // pred_check_branch
      %17 = sbr.rel (0) target = $region17
    $region16: #{meme_classifier_forward.1} parent=1 // pred_region
      _
    $region17: #{meme_classifier_forward.1} parent=1 // pred_fallthru
      _
    %v18 = vld [vmem:[%s0] sm:$0xf]
    %v19 = vld [vmem:[%s0 + $0x4] sm:$0xf]
    %v20 = vld [vmem:[%s0 + $0x8] sm:$0xf]
    %v21 = vld [vmem:[%s0 + $0xc] sm:$0xf]
    %v22 = vld [vmem:[%s2] sm:$0xf]
    %v23 = vld [vmem:[%s2 + $0x4] sm:$0xf]
    %v24 = vld [vmem:[%s2 + $0x8] sm:$0xf]
    %v25 = vld [vmem:[%s2 + $0xc] sm:$0xf]
    %v26 = vld [vmem:[%s2 + $0x10] sm:$0xf]
    %v27 = vld [vmem:[%s2 + $0x14] sm:$0xf]
    %v28 = vld [vmem:[%s2 + $0x18] sm:$0xf]
    %v29 = vld [vmem:[%s2 + $0x1c] sm:$0xf]
    %v30 = vld [vmem:[%s2 + $0x20] sm:$0xf]
    %v31 = vld [vmem:[%s2 + $0x24] sm:$0xf]
    %v32 = vld [vmem:[%s2 + $0x28] sm:$0xf]
    %v33 = vld [vmem:[%s2 + $0x2c] sm:$0xf]
    %v34 = vld [vmem:[%s2 + $0x30] sm:$0xf]
    %v35 = vld [vmem:[%s2 + $0x34] sm:$0xf]
    %v36 = vld [vmem:[%s2 + $0x38] sm:$0xf]
    %v37 = vld [vmem:[%s2 + $0x3c] sm:$0xf]
    %v38 = vld [vmem:[%s2 + $0x40] sm:$0xf]
    %v39 = vld [vmem:[%s2 + $0x44] sm:$0xf]
    %v40 = vld [vmem:[%s2 + $0x48] sm:$0xf]
    %v41 = vld [vmem:[%s2 + $0x4c] sm:$0xf]
    %v42 = vld [vmem:[%s2 + $0x50] sm:$0xf]
    %v43 = vld [vmem:[%s2 + $0x54] sm:$0xf]
    %v44 = vld [vmem:[%s2 + $0x58] sm:$0xf]
    %v45 = vld [vmem:[%s2 + $0x5c] sm:$0xf]
    %v46 = vld [vmem:[%s2 + $0x60] sm:$0xf]
    %v47 = vld [vmem:[%s2 + $0x64] sm:$0xf]
    %v48 = vld [vmem:[%s2 + $0x68] sm:$0xf]
    %v49 = vld [vmem:[%s2 + $0x6c] sm:$0xf]
    %v50 = vld [vmem:[%s2 + $0x70] sm:$0xf]
    %v51 = vld [vmem:[%s2 + $0x74] sm:$0xf]
    %v52 = vld [vmem:[%s2 + $0x78] sm:$0xf]
    %v53 = vld [vmem:[%s2 + $0x7c] sm:$0xf]
    %v54 = vld [vmem:[%s2 + $0x80] sm:$0xf]
    %v55 = vld [vmem:[%s2 + $0x84] sm:$0xf]
    %v56 = vld [vmem:[%s2 + $0x88] sm:$0xf]
    %v57 = vld [vmem:[%s2 + $0x8c] sm:$0xf]
    %v58 = vld [vmem:[%s2 + $0x90] sm:$0xf]
    %v59 = vld [vmem:[%s2 + $0x94] sm:$0xf]
    %v60 = vld [vmem:[%s2 + $0x98] sm:$0xf]
    %v61 = vld [vmem:[%s2 + $0x9c] sm:$0xf]
    %v62 = vld [vmem:[%s2 + $0xa0] sm:$0xf]
    %v63 = vld [vmem:[%s2 + $0xa4] sm:$0xf]
    %v64 = vld [vmem:[%s2 + $0xa8] sm:$0xf]
    %v65 = vld [vmem:[%s2 + $0xac] sm:$0xf]
    %v66 = vld [vmem:[%s2 + $0xb0] sm:$0xf]
    %v67 = vld [vmem:[%s2 + $0xb4] sm:$0xf]
    %v68 = vld [vmem:[%s2 + $0xb8] sm:$0xf]
    %v69 = vld [vmem:[%s2 + $0xbc] sm:$0xf]
    %v70 = vld [vmem:[%s2 + $0xc0] sm:$0xf]
    %v71 = vld [vmem:[%s2 + $0xc4] sm:$0xf]
    %v72 = vld [vmem:[%s2 + $0xc8] sm:$0xf]
    %v73 = vld [vmem:[%s2 + $0xcc] sm:$0xf]
    %v74 = vld [vmem:[%s2 + $0xd0] sm:$0xf]
    %v75 = vld [vmem:[%s2 + $0xd4] sm:$0xf]
    %v76 = vld [vmem:[%s2 + $0xd8] sm:$0xf]
    %v77 = vld [vmem:[%s2 + $0xdc] sm:$0xf]
    %v78 = vld [vmem:[%s2 + $0xe0] sm:$0xf]
    %v79 = vld [vmem:[%s2 + $0xe4] sm:$0xf]
    %v80 = vld [vmem:[%s2 + $0xe8] sm:$0xf]
    %v81 = vld [vmem:[%s2 + $0xec] sm:$0xf]
    %v82 = vld [vmem:[%s2 + $0xf0] sm:$0xf]
    %v83 = vld [vmem:[%s2 + $0xf4] sm:$0xf]
    %v84 = vld [vmem:[%s2 + $0xf8] sm:$0xf]
    %v85 = vld [vmem:[%s2 + $0xfc] sm:$0xf]
    %v86 = vld [vmem:[%s1] sm:$0x3f]
    %v87 = vld [vmem:[%s1 + $0x6] sm:$0x3f]
    %v88 = vld [vmem:[%s1 + $0xc] sm:$0x3f]
    %v89 = vld [vmem:[%s1 + $0x12] sm:$0x3f]
    %v90 = vld [vmem:[%s2 + $0x100] sm:$0xf]
    %v91 = vld [vmem:[%s2 + $0x104] sm:$0xf]
    %v92 = vld [vmem:[%s2 + $0x108] sm:$0xf]
    %v93 = vld [vmem:[%s2 + $0x10c] sm:$0xf]
    %v94 = vld [vmem:[%s2 + $0x110] sm:$0xf]
    %v95 = vld [vmem:[%s2 + $0x114] sm:$0xf]
    %v96 = vld [vmem:[%s2 + $0x118] sm:$0xf]
    %v97 = vld [vmem:[%s2 + $0x11c] sm:$0xf]
    %v98 = vld [vmem:[%s2 + $0x120] sm:$0xf]
    %v99 = vld [vmem:[%s2 + $0x124] sm:$0xf]
    %v100 = vld [vmem:[%s2 + $0x128] sm:$0xf]
    %v101 = vld [vmem:[%s2 + $0x12c] sm:$0xf]
    %v102 = vld [vmem:[%s2 + $0x130] sm:$0xf]
    %v103 = vld [vmem:[%s2 + $0x134] sm:$0xf]
    %v104 = vld [vmem:[%s2 + $0x138] sm:$0xf]
    %v105 = vld [vmem:[%s2 + $0x13c] sm:$0xf]
    %v106 = vld [vmem:[%s2 + $0x140] sm:$0xf]
    %v107 = vld [vmem:[%s2 + $0x144] sm:$0xf]
    %v108 = vld [vmem:[%s2 + $0x148] sm:$0xf]
    %v109 = vld [vmem:[%s2 + $0x14c] sm:$0xf]
    %v110 = vld [vmem:[%s2 + $0x150] sm:$0xf]
    %v111 = vld [vmem:[%s2 + $0x154] sm:$0xf]
    %v112 = vld [vmem:[%s2 + $0x158] sm:$0xf]
    %v113 = vld [vmem:[%s2 + $0x15c] sm:$0xf]
    %v114 = vld [vmem:[%s2 + $0x160] sm:$0xf]
    %v115 = vld [vmem:[%s2 + $0x164] sm:$0xf]
    %v116 = vld [vmem:[%s2 + $0x168] sm:$0xf]
    %v117 = vld [vmem:[%s2 + $0x16c] sm:$0xf]
    %v118 = vld [vmem:[%s2 + $0x170] sm:$0xf]
    %v119 = vld [vmem:[%s2 + $0x174] sm:$0xf]
    %v120 = vld [vmem:[%s2 + $0x178] sm:$0xf]
    %v121 = vld [vmem:[%s2 + $0x17c] sm:$0xf]
    %v122 = vld [vmem:[%s2 + $0x180] sm:$0xf]
    %v123 = vld [vmem:[%s2 + $0x184] sm:$0xf]
    %v124 = vld [vmem:[%s2 + $0x188] sm:$0xf]
    %v125 = vld [vmem:[%s2 + $0x18c] sm:$0xf]
    %v126 = vld [vmem:[%s2 + $0x190] sm:$0xf]
    %v127 = vld [vmem:[%s2 + $0x194] sm:$0xf]
    %v128 = vld [vmem:[%s2 + $0x198] sm:$0xf]
    %v129 = vld [vmem:[%s2 + $0x19c] sm:$0xf]
    %v130 = vld [vmem:[%s2 + $0x1a0] sm:$0xf]
    %v131 = vld [vmem:[%s2 + $0x1a4] sm:$0xf]
    %v132 = vld [vmem:[%s2 + $0x1a8] sm:$0xf]
    %v133 = vld [vmem:[%s2 + $0x1ac] sm:$0xf]
    %v134 = vld [vmem:[%s2 + $0x1b0] sm:$0xf]
    %v135 = vld [vmem:[%s2 + $0x1b4] sm:$0xf]
    %v136 = vld [vmem:[%s2 + $0x1b8] sm:$0xf]
    %v137 = vld [vmem:[%s2 + $0x1bc] sm:$0xf]
    %v138 = vld [vmem:[%s2 + $0x1c0] sm:$0xf]
    %v139 = vld [vmem:[%s2 + $0x1c4] sm:$0xf]
    %v140 = vld [vmem:[%s2 + $0x1c8] sm:$0xf]
    %v141 = vld [vmem:[%s2 + $0x1cc] sm:$0xf]
    %v142 = vld [vmem:[%s2 + $0x1d0] sm:$0xf]
    %v143 = vld [vmem:[%s2 + $0x1d4] sm:$0xf]
    %v144 = vld [vmem:[%s2 + $0x1d8] sm:$0xf]
    %v145 = vld [vmem:[%s2 + $0x1dc] sm:$0xf]
    %v146 = vld [vmem:[%s2 + $0x1e0] sm:$0xf]
    %v147 = vld [vmem:[%s2 + $0x1e4] sm:$0xf]
    %v148 = vld [vmem:[%s2 + $0x1e8] sm:$0xf]
    %v149 = vld [vmem:[%s2 + $0x1ec] sm:$0xf]
    %v150 = vld [vmem:[%s2 + $0x1f0] sm:$0xf]
    %v151 = vld [vmem:[%s2 + $0x1f4] sm:$0xf]
    %v152 = vld [vmem:[%s2 + $0x1f8] sm:$0xf]
    %v153 = vld [vmem:[%s2 + $0x1fc] sm:$0xf]
    %v154 = vld [vmem:[%s2 + $0x200] sm:$0xf]
    %v155 = vld [vmem:[%s2 + $0x204] sm:$0xf]
    %v156 = vld [vmem:[%s2 + $0x208] sm:$0xf]
    %v157 = vld [vmem:[%s2 + $0x20c] sm:$0xf]
    %v158 = vld [vmem:[%s2 + $0x210] sm:$0xf]
    %v159 = vld [vmem:[%s2 + $0x214] sm:$0xf]
    %v160 = vld [vmem:[%s2 + $0x218] sm:$0xf]
    %v161 = vld [vmem:[%s2 + $0x21c] sm:$0xf]
    %v162 = vld [vmem:[%s2 + $0x220] sm:$0xf]
    %v163 = vld [vmem:[%s2 + $0x224] sm:$0xf]
    %v164 = vld [vmem:[%s2 + $0x228] sm:$0xf]
    %v165 = vld [vmem:[%s2 + $0x22c] sm:$0xf]
    %v166 = vld [vmem:[%s2 + $0x230] sm:$0xf]
    %v167 = vld [vmem:[%s2 + $0x234] sm:$0xf]
    %v168 = vld [vmem:[%s2 + $0x238] sm:$0xf]
    %v169 = vld [vmem:[%s2 + $0x23c] sm:$0xf]
    %v170 = vld [vmem:[%s2 + $0x240] sm:$0xf]
    %v171 = vld [vmem:[%s2 + $0x244] sm:$0xf]
    %v172 = vld [vmem:[%s2 + $0x248] sm:$0xf]
    %v173 = vld [vmem:[%s2 + $0x24c] sm:$0xf]
    %v174 = vld [vmem:[%s2 + $0x250] sm:$0xf]
    %v175 = vld [vmem:[%s2 + $0x254] sm:$0xf]
    %v176 = vld [vmem:[%s2 + $0x258] sm:$0xf]
    %v177 = vld [vmem:[%s2 + $0x25c] sm:$0xf]
    %v178 = vld [vmem:[%s2 + $0x260] sm:$0xf]
    %v179 = vld [vmem:[%s2 + $0x264] sm:$0xf]
    %v180 = vld [vmem:[%s2 + $0x268] sm:$0xf]
    %v181 = vld [vmem:[%s2 + $0x26c] sm:$0xf]
    %v182 = vld [vmem:[%s2 + $0x270] sm:$0xf]
    %v183 = vld [vmem:[%s2 + $0x274] sm:$0xf]
    %v184 = vld [vmem:[%s2 + $0x278] sm:$0xf]
    %v185 = vld [vmem:[%s2 + $0x27c] sm:$0xf]
    %187 = vst [vmem:[#allocation1] ss:$9 sm:$0xff] %v86
    %s189 = scalar_lea.vmem [#allocation1], 1
    %190 = vst [vmem:[%s189] ss:$9 sm:$0xff] %v87
    %s192 = scalar_lea.vmem [#allocation1], 2
    %193 = vst [vmem:[%s192] ss:$9 sm:$0xff] %v88
    %s195 = scalar_lea.vmem [#allocation1], 3
    %196 = vst [vmem:[%s195] ss:$9 sm:$0xff] %v89
    %v197 = vld [vmem:[#allocation1] sm:$0xff]
    %v198 = vld [vmem:[#allocation1 + $0x9] sm:$0xff]
    %v199 = vld [vmem:[#allocation1 + $0x12] sm:$0xff]
    %v200 = vld [vmem:[#allocation1 + $0x1b] sm:$0xff]
    %v201 = vld [vmem:[#allocation1 + $0x24] sm:$0xff]
    %v202 = vld [vmem:[#allocation1 + $0x2d] sm:$0xff]
    %v305 = vunpack.c.l.b16 %v90
    %v306 = vunpack.c.l.b16 %v91
    %v307 = vunpack.c.l.b16 %v92
    %v308 = vunpack.c.l.b16 %v93
    %v309 = vunpack.c.l.b16 %v94
    %v310 = vunpack.c.l.b16 %v95
    %v311 = vunpack.c.l.b16 %v96
    %v312 = vunpack.c.l.b16 %v97
    %v313 = vunpack.c.l.b16 %v98
    %v314 = vunpack.c.l.b16 %v99
    %v315 = vunpack.c.l.b16 %v100
    %v316 = vunpack.c.l.b16 %v101
    %v317 = vunpack.c.l.b16 %v102
    %v318 = vunpack.c.l.b16 %v103
    %v319 = vunpack.c.l.b16 %v104
    %v320 = vunpack.c.l.b16 %v105
    %v321 = vunpack.c.l.b16 %v106
    %v322 = vunpack.c.l.b16 %v107
    %v323 = vunpack.c.l.b16 %v108
    %v324 = vunpack.c.l.b16 %v109
    %v325 = vunpack.c.l.b16 %v110
    %v326 = vunpack.c.l.b16 %v111
    %v327 = vunpack.c.l.b16 %v112
    %v328 = vunpack.c.l.b16 %v113
    %v329 = vunpack.c.l.b16 %v114
    %v330 = vunpack.c.l.b16 %v115
    %v331 = vunpack.c.l.b16 %v116
    %v332 = vunpack.c.l.b16 %v117
    %v333 = vunpack.c.l.b16 %v118
    %v334 = vunpack.c.l.b16 %v119
    %v335 = vunpack.c.l.b16 %v120
    %v336 = vunpack.c.l.b16 %v121
    %v337 = vunpack.c.l.b16 %v122
    %v338 = vunpack.c.l.b16 %v123
    %v339 = vunpack.c.l.b16 %v124
    %v340 = vunpack.c.l.b16 %v125
    %v341 = vunpack.c.l.b16 %v126
    %v342 = vunpack.c.l.b16 %v127
    %v343 = vunpack.c.l.b16 %v128
    %v344 = vunpack.c.l.b16 %v129
    %v345 = vunpack.c.l.b16 %v130
    %v346 = vunpack.c.l.b16 %v131
    %v347 = vunpack.c.l.b16 %v132
    %v348 = vunpack.c.l.b16 %v133
    %v349 = vunpack.c.l.b16 %v134
    %v350 = vunpack.c.l.b16 %v135
    %v351 = vunpack.c.l.b16 %v136
    %v352 = vunpack.c.l.b16 %v137
    %v353 = vunpack.c.l.b16 %v138
    %v354 = vunpack.c.l.b16 %v139
    %v355 = vunpack.c.l.b16 %v140
    %v356 = vunpack.c.l.b16 %v141
    %v357 = vunpack.c.l.b16 %v142
    %v358 = vunpack.c.l.b16 %v143
    %v359 = vunpack.c.l.b16 %v144
    %v360 = vunpack.c.l.b16 %v145
    %v361 = vunpack.c.l.b16 %v146
    %v362 = vunpack.c.l.b16 %v147
    %v363 = vunpack.c.l.b16 %v148
    %v364 = vunpack.c.l.b16 %v149
    %v365 = vunpack.c.l.b16 %v150
    %v366 = vunpack.c.l.b16 %v151
    %v367 = vunpack.c.l.b16 %v152
    %v368 = vunpack.c.l.b16 %v153
    %v369 = vunpack.c.l.b16 %v154
    %v370 = vunpack.c.l.b16 %v155
    %v371 = vunpack.c.l.b16 %v156
    %v372 = vunpack.c.l.b16 %v157
    %v373 = vunpack.c.l.b16 %v158
    %v374 = vunpack.c.l.b16 %v159
    %v375 = vunpack.c.l.b16 %v160
    %v376 = vunpack.c.l.b16 %v161
    %v377 = vunpack.c.l.b16 %v162
    %v378 = vunpack.c.l.b16 %v163
    %v379 = vunpack.c.l.b16 %v164
    %v380 = vunpack.c.l.b16 %v165
    %v381 = vunpack.c.l.b16 %v166
    %v382 = vunpack.c.l.b16 %v167
    %v383 = vunpack.c.l.b16 %v168
    %v384 = vunpack.c.l.b16 %v169
    %v385 = vunpack.c.l.b16 %v170
    %v386 = vunpack.c.l.b16 %v171
    %v387 = vunpack.c.l.b16 %v172
    %v388 = vunpack.c.l.b16 %v173
    %v389 = vunpack.c.l.b16 %v174
    %v390 = vunpack.c.l.b16 %v175
    %v391 = vunpack.c.l.b16 %v176
    %v392 = vunpack.c.l.b16 %v177
    %v393 = vunpack.c.l.b16 %v178
    %v394 = vunpack.c.l.b16 %v179
    %v395 = vunpack.c.l.b16 %v180
    %v396 = vunpack.c.l.b16 %v181
    %v397 = vunpack.c.l.b16 %v182
    %v398 = vunpack.c.l.b16 %v183
    %v399 = vunpack.c.l.b16 %v184
    %v400 = vunpack.c.l.b16 %v185
    %v401 = vpack.c.b16 %v306, %v305
    %v402 = vpack.c.b16 %v308, %v307
    %v403 = vpack.c.b16 %v310, %v309
    %v404 = vpack.c.b16 %v312, %v311
    %v405 = vpack.c.b16 %v314, %v313
    %v406 = vpack.c.b16 %v316, %v315
    %v407 = vpack.c.b16 %v318, %v317
    %v408 = vpack.c.b16 %v320, %v319
    %v409 = vpack.c.b16 %v322, %v321
    %v410 = vpack.c.b16 %v324, %v323
    %v411 = vpack.c.b16 %v326, %v325
    %v412 = vpack.c.b16 %v328, %v327
    %v413 = vpack.c.b16 %v330, %v329
    %v414 = vpack.c.b16 %v332, %v331
    %v415 = vpack.c.b16 %v334, %v333
    %v416 = vpack.c.b16 %v336, %v335
    %v417 = vpack.c.b16 %v338, %v337
    %v418 = vpack.c.b16 %v340, %v339
    %v419 = vpack.c.b16 %v342, %v341
    %v420 = vpack.c.b16 %v344, %v343
    %v421 = vpack.c.b16 %v346, %v345
    %v422 = vpack.c.b16 %v348, %v347
    %v423 = vpack.c.b16 %v350, %v349
    %v424 = vpack.c.b16 %v352, %v351
    %v425 = vpack.c.b16 %v354, %v353
    %v426 = vpack.c.b16 %v356, %v355
    %v427 = vpack.c.b16 %v358, %v357
    %v428 = vpack.c.b16 %v360, %v359
    %v429 = vpack.c.b16 %v362, %v361
    %v430 = vpack.c.b16 %v364, %v363
    %v431 = vpack.c.b16 %v366, %v365
    %v432 = vpack.c.b16 %v368, %v367
    %v433 = vpack.c.b16 %v370, %v369
    %v434 = vpack.c.b16 %v372, %v371
    %v435 = vpack.c.b16 %v374, %v373
    %v436 = vpack.c.b16 %v376, %v375
    %v437 = vpack.c.b16 %v378, %v377
    %v438 = vpack.c.b16 %v380, %v379
    %v439 = vpack.c.b16 %v382, %v381
    %v440 = vpack.c.b16 %v384, %v383
    %v441 = vpack.c.b16 %v386, %v385
    %v442 = vpack.c.b16 %v388, %v387
    %v443 = vpack.c.b16 %v390, %v389
    %v444 = vpack.c.b16 %v392, %v391
    %v445 = vpack.c.b16 %v394, %v393
    %v446 = vpack.c.b16 %v396, %v395
    %v447 = vpack.c.b16 %v398, %v397
    %v448 = vpack.c.b16 %v400, %v399
    %497 = vmatpush.bf16.msra.mxu0 %v408
    %498 = vmatpush.bf16.msra.mxu0 %v407
    %499 = vmatpush.bf16.msra.mxu0 %v406
    %500 = vmatpush.bf16.msra.mxu0 %v405
    %501 = vmatpush.bf16.msra.mxu0 %v404
    %502 = vmatpush.bf16.msra.mxu0 %v403
    %503 = vmatpush.bf16.msra.mxu0 %v402
    %504 = vmatpush.bf16.msra.mxu0 %v401
    %505 = vmatmul.bf16.gmra.mxu0 %v197
    %v506 = vpop.f32.mrf.mxu0
    %v507 = vadd.f32 0.0, %v506
    %v508 = vpop.f32.mrf.mxu0
    %509 = vdwg.mxu0
    %510 = vmatpush.bf16.msra.mxu0 %v416
    %511 = vmatpush.bf16.msra.mxu0 %v415
    %512 = vmatpush.bf16.msra.mxu0 %v414
    %513 = vmatpush.bf16.msra.mxu0 %v413
    %514 = vmatpush.bf16.msra.mxu0 %v412
    %515 = vmatpush.bf16.msra.mxu0 %v411
    %516 = vmatpush.bf16.msra.mxu0 %v410
    %517 = vmatpush.bf16.msra.mxu0 %v409
    %518 = vmatmul.bf16.gmra.mxu0 %v198
    %v519 = vpop.f32.mrf.mxu0
    %v520 = vadd.f32 %v507, %v519
    %v521 = vpop.f32.mrf.mxu0
    %522 = vdwg.mxu0
    %523 = vmatpush.bf16.msra.mxu0 %v424
    %524 = vmatpush.bf16.msra.mxu0 %v423
    %525 = vmatpush.bf16.msra.mxu0 %v422
    %526 = vmatpush.bf16.msra.mxu0 %v421
    %527 = vmatpush.bf16.msra.mxu0 %v420
    %528 = vmatpush.bf16.msra.mxu0 %v419
    %529 = vmatpush.bf16.msra.mxu0 %v418
    %530 = vmatpush.bf16.msra.mxu0 %v417
    %531 = vmatmul.bf16.gmra.mxu0 %v199
    %v532 = vpop.f32.mrf.mxu0
    %v533 = vadd.f32 %v520, %v532
    %v534 = vpop.f32.mrf.mxu0
    %535 = vdwg.mxu0
    %536 = vmatpush.bf16.msra.mxu0 %v432
    %537 = vmatpush.bf16.msra.mxu0 %v431
    %538 = vmatpush.bf16.msra.mxu0 %v430
    %539 = vmatpush.bf16.msra.mxu0 %v429
    %540 = vmatpush.bf16.msra.mxu0 %v428
    %541 = vmatpush.bf16.msra.mxu0 %v427
    %542 = vmatpush.bf16.msra.mxu0 %v426
    %543 = vmatpush.bf16.msra.mxu0 %v425
    %544 = vmatmul.bf16.gmra.mxu0 %v200
    %v545 = vpop.f32.mrf.mxu0
    %v546 = vadd.f32 %v533, %v545
    %v547 = vpop.f32.mrf.mxu0
    %548 = vdwg.mxu0
    %549 = vmatpush.bf16.msra.mxu0 %v440
    %550 = vmatpush.bf16.msra.mxu0 %v439
    %551 = vmatpush.bf16.msra.mxu0 %v438
    %552 = vmatpush.bf16.msra.mxu0 %v437
    %553 = vmatpush.bf16.msra.mxu0 %v436
    %554 = vmatpush.bf16.msra.mxu0 %v435
    %555 = vmatpush.bf16.msra.mxu0 %v434
    %556 = vmatpush.bf16.msra.mxu0 %v433
    %557 = vmatmul.bf16.gmra.mxu0 %v201
    %v558 = vpop.f32.mrf.mxu0
    %v559 = vadd.f32 %v546, %v558
    %v560 = vpop.f32.mrf.mxu0
    %561 = vdwg.mxu0
    %562 = vmatpush.bf16.msra.mxu0 %v448
    %563 = vmatpush.bf16.msra.mxu0 %v447
    %564 = vmatpush.bf16.msra.mxu0 %v446
    %565 = vmatpush.bf16.msra.mxu0 %v445
    %566 = vmatpush.bf16.msra.mxu0 %v444
    %567 = vmatpush.bf16.msra.mxu0 %v443
    %568 = vmatpush.bf16.msra.mxu0 %v442
    %569 = vmatpush.bf16.msra.mxu0 %v441
    %570 = vmatmul.bf16.gmra.mxu0 %v202
    %v571 = vpop.f32.mrf.mxu0
    %v572 = vadd.f32 %v559, %v571
    %v573 = vpop.f32.mrf.mxu0
    %574 = vdwg.mxu0
    %576 = vst [vmem:[#allocation1] ss:$9 sm:$0xff] %v18
    %s578 = scalar_lea.vmem [#allocation1], 1
    %579 = vst [vmem:[%s578] ss:$9 sm:$0xff] %v19
    %s581 = scalar_lea.vmem [#allocation1], 2
    %582 = vst [vmem:[%s581] ss:$9 sm:$0xff] %v20
    %s584 = scalar_lea.vmem [#allocation1], 3
    %585 = vst [vmem:[%s584] ss:$9 sm:$0xff] %v21
    %v586 = vld [vmem:[#allocation1] sm:$0xff]
    %v587 = vld [vmem:[#allocation1 + $0x9] sm:$0xff]
    %v588 = vld [vmem:[#allocation1 + $0x12] sm:$0xff]
    %v589 = vld [vmem:[#allocation1 + $0x1b] sm:$0xff]
    %v658 = vunpack.c.l.b16 %v22
    %v659 = vunpack.c.l.b16 %v23
    %v660 = vunpack.c.l.b16 %v24
    %v661 = vunpack.c.l.b16 %v25
    %v662 = vunpack.c.l.b16 %v26
    %v663 = vunpack.c.l.b16 %v27
    %v664 = vunpack.c.l.b16 %v28
    %v665 = vunpack.c.l.b16 %v29
    %v666 = vunpack.c.l.b16 %v30
    %v667 = vunpack.c.l.b16 %v31
    %v668 = vunpack.c.l.b16 %v32
    %v669 = vunpack.c.l.b16 %v33
    %v670 = vunpack.c.l.b16 %v34
    %v671 = vunpack.c.l.b16 %v35
    %v672 = vunpack.c.l.b16 %v36
    %v673 = vunpack.c.l.b16 %v37
    %v674 = vunpack.c.l.b16 %v38
    %v675 = vunpack.c.l.b16 %v39
    %v676 = vunpack.c.l.b16 %v40
    %v677 = vunpack.c.l.b16 %v41
    %v678 = vunpack.c.l.b16 %v42
    %v679 = vunpack.c.l.b16 %v43
    %v680 = vunpack.c.l.b16 %v44
    %v681 = vunpack.c.l.b16 %v45
    %v682 = vunpack.c.l.b16 %v46
    %v683 = vunpack.c.l.b16 %v47
    %v684 = vunpack.c.l.b16 %v48
    %v685 = vunpack.c.l.b16 %v49
    %v686 = vunpack.c.l.b16 %v50
    %v687 = vunpack.c.l.b16 %v51
    %v688 = vunpack.c.l.b16 %v52
    %v689 = vunpack.c.l.b16 %v53
    %v690 = vunpack.c.l.b16 %v54
    %v691 = vunpack.c.l.b16 %v55
    %v692 = vunpack.c.l.b16 %v56
    %v693 = vunpack.c.l.b16 %v57
    %v694 = vunpack.c.l.b16 %v58
    %v695 = vunpack.c.l.b16 %v59
    %v696 = vunpack.c.l.b16 %v60
    %v697 = vunpack.c.l.b16 %v61
    %v698 = vunpack.c.l.b16 %v62
    %v699 = vunpack.c.l.b16 %v63
    %v700 = vunpack.c.l.b16 %v64
    %v701 = vunpack.c.l.b16 %v65
    %v702 = vunpack.c.l.b16 %v66
    %v703 = vunpack.c.l.b16 %v67
    %v704 = vunpack.c.l.b16 %v68
    %v705 = vunpack.c.l.b16 %v69
    %v706 = vunpack.c.l.b16 %v70
    %v707 = vunpack.c.l.b16 %v71
    %v708 = vunpack.c.l.b16 %v72
    %v709 = vunpack.c.l.b16 %v73
    %v710 = vunpack.c.l.b16 %v74
    %v711 = vunpack.c.l.b16 %v75
    %v712 = vunpack.c.l.b16 %v76
    %v713 = vunpack.c.l.b16 %v77
    %v714 = vunpack.c.l.b16 %v78
    %v715 = vunpack.c.l.b16 %v79
    %v716 = vunpack.c.l.b16 %v80
    %v717 = vunpack.c.l.b16 %v81
    %v718 = vunpack.c.l.b16 %v82
    %v719 = vunpack.c.l.b16 %v83
    %v720 = vunpack.c.l.b16 %v84
    %v721 = vunpack.c.l.b16 %v85
    %v722 = vpack.c.b16 %v659, %v658
    %v723 = vpack.c.b16 %v661, %v660
    %v724 = vpack.c.b16 %v663, %v662
    %v725 = vpack.c.b16 %v665, %v664
    %v726 = vpack.c.b16 %v667, %v666
    %v727 = vpack.c.b16 %v669, %v668
    %v728 = vpack.c.b16 %v671, %v670
    %v729 = vpack.c.b16 %v673, %v672
    %v730 = vpack.c.b16 %v675, %v674
    %v731 = vpack.c.b16 %v677, %v676
    %v732 = vpack.c.b16 %v679, %v678
    %v733 = vpack.c.b16 %v681, %v680
    %v734 = vpack.c.b16 %v683, %v682
    %v735 = vpack.c.b16 %v685, %v684
    %v736 = vpack.c.b16 %v687, %v686
    %v737 = vpack.c.b16 %v689, %v688
    %v738 = vpack.c.b16 %v691, %v690
    %v739 = vpack.c.b16 %v693, %v692
    %v740 = vpack.c.b16 %v695, %v694
    %v741 = vpack.c.b16 %v697, %v696
    %v742 = vpack.c.b16 %v699, %v698
    %v743 = vpack.c.b16 %v701, %v700
    %v744 = vpack.c.b16 %v703, %v702
    %v745 = vpack.c.b16 %v705, %v704
    %v746 = vpack.c.b16 %v707, %v706
    %v747 = vpack.c.b16 %v709, %v708
    %v748 = vpack.c.b16 %v711, %v710
    %v749 = vpack.c.b16 %v713, %v712
    %v750 = vpack.c.b16 %v715, %v714
    %v751 = vpack.c.b16 %v717, %v716
    %v752 = vpack.c.b16 %v719, %v718
    %v753 = vpack.c.b16 %v721, %v720
    %786 = vmatpush.bf16.msra.mxu0 %v729
    %787 = vmatpush.bf16.msra.mxu0 %v728
    %788 = vmatpush.bf16.msra.mxu0 %v727
    %789 = vmatpush.bf16.msra.mxu0 %v726
    %790 = vmatpush.bf16.msra.mxu0 %v725
    %791 = vmatpush.bf16.msra.mxu0 %v724
    %792 = vmatpush.bf16.msra.mxu0 %v723
    %793 = vmatpush.bf16.msra.mxu0 %v722
    %794 = vmatmul.bf16.gmra.mxu0 %v586
    %v795 = vpop.f32.mrf.mxu0
    %v796 = vadd.f32 %v572, %v795
    %v797 = vpop.f32.mrf.mxu0
    %798 = vdwg.mxu0
    %799 = vmatpush.bf16.msra.mxu0 %v737
    %800 = vmatpush.bf16.msra.mxu0 %v736
    %801 = vmatpush.bf16.msra.mxu0 %v735
    %802 = vmatpush.bf16.msra.mxu0 %v734
    %803 = vmatpush.bf16.msra.mxu0 %v733
    %804 = vmatpush.bf16.msra.mxu0 %v732
    %805 = vmatpush.bf16.msra.mxu0 %v731
    %806 = vmatpush.bf16.msra.mxu0 %v730
    %807 = vmatmul.bf16.gmra.mxu0 %v587
    %v808 = vpop.f32.mrf.mxu0
    %v809 = vadd.f32 %v796, %v808
    %v810 = vpop.f32.mrf.mxu0
    %811 = vdwg.mxu0
    %812 = vmatpush.bf16.msra.mxu0 %v745
    %813 = vmatpush.bf16.msra.mxu0 %v744
    %814 = vmatpush.bf16.msra.mxu0 %v743
    %815 = vmatpush.bf16.msra.mxu0 %v742
    %816 = vmatpush.bf16.msra.mxu0 %v741
    %817 = vmatpush.bf16.msra.mxu0 %v740
    %818 = vmatpush.bf16.msra.mxu0 %v739
    %819 = vmatpush.bf16.msra.mxu0 %v738
    %820 = vmatmul.bf16.gmra.mxu0 %v588
    %v821 = vpop.f32.mrf.mxu0
    %v822 = vadd.f32 %v809, %v821
    %v823 = vpop.f32.mrf.mxu0
    %824 = vdwg.mxu0
    %825 = vmatpush.bf16.msra.mxu0 %v753
    %826 = vmatpush.bf16.msra.mxu0 %v752
    %827 = vmatpush.bf16.msra.mxu0 %v751
    %828 = vmatpush.bf16.msra.mxu0 %v750
    %829 = vmatpush.bf16.msra.mxu0 %v749
    %830 = vmatpush.bf16.msra.mxu0 %v748
    %831 = vmatpush.bf16.msra.mxu0 %v747
    %832 = vmatpush.bf16.msra.mxu0 %v746
    %833 = vmatmul.bf16.gmra.mxu0 %v589
    %v834 = vpop.f32.mrf.mxu0
    %v835 = vadd.f32 %v822, %v834
    %v836 = vpop.f32.mrf.mxu0
    %837 = vdwg.mxu0
    %v838 = vld [vmem:[%s3] sm:$0x1]
    %v840 = vperm.slane %v838, 0
    %v842 = vadd.f32 %v835, %v840
    %843 = vst [vmem:[#allocation2] sm:$0xff] %v842
    // Predicated region
    $region18: #{meme_classifier_forward.1} parent=1 // pred_check
      _
    $region19: #{meme_classifier_forward.1} parent=1 // pred_check_branch
      %845 = sbr.rel (0) target = $region21
    $region20: #{meme_classifier_forward.1} parent=1 // pred_region
      %847 = vsyncadd [#allocation3], 96
      %s848 = sshll.u32 [#allocation2], 4
      %s849 = int_to_ptr.vmem [resolvable:$true] %s848
      %s850 = sshll.u32 %s4, 4
      %s851 = int_to_ptr.hbm [resolvable:$true] %s850
      %856 = dma.vmem_to_hbm [thread:$0]  %s849, 32, %s851, [#allocation3], 32, 32, 2
    $region21: #{meme_classifier_forward.1} parent=1 // pred_fallthru
      _
    // Predicated region
    $region22: #{meme_classifier_forward.1} parent=1 // pred_check
      _
    $region23: #{meme_classifier_forward.1} parent=1 // pred_check_branch
      %858 = sbr.rel (0) target = $region25
    $region24: #{meme_classifier_forward.1} parent=1 // pred_region
      %860 = dma.done [#allocation3], 128
    $region25: #{meme_classifier_forward.1} parent=1 // pred_fallthru
      _
    %861 = vsyncpa [#allocation3], 1

</llo_original>
